<compile_context>
chip_gen: v7x
topology: tpu7x:2x2x1
jax: 0.10.0
libtpu: 0.0.40
codegen_flags: <defaults>
</compile_context>

<pallas_src>
import functools

import numpy as np
import jax
import jax.numpy as jnp
from jax import lax
from jax.experimental import pallas as pl
from jax.experimental.pallas import tpu as pltpu


def _round_up(x, m):
    return ((x + m - 1) // m) * m


# ---------------------------------------------------------------------------
# Pallas kernel 1: deformable PS-ROI pooling (group_size == 1, 1 class).
# One grid step = one block of R ROIs (all belonging to the same image).
# ---------------------------------------------------------------------------
def _deform_roi_pool_kernel(block_batch_ref, ws_ref, hs_ref, data_ref, out_ref, *, H, W):
    del block_batch_ref  # only consumed by the data index_map
    f32 = jnp.float32

    ws = ws_ref[0]                         # (spp, R*P) sample x coordinates
    hs = hs_ref[0]                         # (spp, R*P) sample y coordinates

    valid_w = ((ws >= -0.5) & (ws <= W - 0.5)).astype(f32)
    valid_h = ((hs >= -0.5) & (hs <= H - 0.5)).astype(f32)
    wsc = jnp.clip(ws, 0.0, W - 1.0)
    hsc = jnp.clip(hs, 0.0, H - 1.0)

    iota_w = lax.broadcasted_iota(jnp.int32, (W, 1, 1), 0).astype(f32)
    iota_h = lax.broadcasted_iota(jnp.int32, (H, 1, 1), 0).astype(f32)

    # Bilinear "triangle" weights summed over the sample grid (vectorized):
    #   WW[w, rp] = sum_s max(1 - |w - x_s|, 0) * valid_x_s      (W, R*P)
    #   WH[h, rp] = sum_s max(1 - |h - y_s|, 0) * valid_y_s      (H, R*P)
    # The spp x spp double sum factorizes because the sample grid and the
    # validity test are separable in x / y.
    WW = jnp.sum(jnp.maximum(1.0 - jnp.abs(iota_w - wsc[None]), 0.0) * valid_w[None], axis=1)
    WH = jnp.sum(jnp.maximum(1.0 - jnp.abs(iota_h - hsc[None]), 0.0) * valid_h[None], axis=1)
    cnt = (jnp.sum(valid_w, axis=0, keepdims=True) *
           jnp.sum(valid_h, axis=0, keepdims=True))              # (1, R*P)

    # Combined separable gather weights -> ONE MXU matmul with K = H*W.
    rp = WW.shape[-1]
    G = (WH[:, None, :] * WW[None, :, :]).reshape(H * W, rp)     # (H*W, R*P)

    data2 = data_ref[0]                                          # (C, H*W)
    acc = jnp.dot(data2, G.astype(data2.dtype),
                  preferred_element_type=jnp.float32)            # (C, R*P)
    out = jnp.where(cnt > 0.0, acc / jnp.maximum(cnt, 1.0), 0.0)
    out_ref[0] = out.astype(out_ref.dtype)


@functools.partial(
    jax.jit,
    static_argnames=("spatial_scale", "out_size", "sample_per_part",
                     "trans_std", "part_size", "roi_block", "vmem_limit_bytes"))
def deform_roi_pool(data, rois, offset, *, spatial_scale, out_size,
                    sample_per_part, trans_std, part_size,
                    roi_block=None, vmem_limit_bytes=None):
    """Equivalent of deform_psroi_pooling_cuda_forward (group_size == 1).

    The no_trans path of the original op is obtained by passing a zero
    `offset` (the trans contribution is exactly zero in that case).
    """
    B, C, H, W = data.shape
    N = rois.shape[0]
    oh = ow = out_size
    P = oh * ow
    spp = sample_per_part

    # Pick R so the packed lane dim R*P is >= 128 (lane-dense output stores).
    if roi_block is None:
        roi_block = max(8, _round_up(-(-128 // P), 8))
    R = roi_block

    if data.dtype not in (jnp.float32, jnp.bfloat16):
        data = data.astype(jnp.float32)      # keep bf16 feature maps bf16
    rois = rois.astype(jnp.float32)
    offset = offset.astype(jnp.float32)

    batch_idx = rois[:, 0].astype(jnp.int32)

    # ---- per-ROI geometry (cheap JAX glue, mirrors the CUDA forward) --------
    xs = jnp.floor(rois[:, 1] + 0.5) * spatial_scale - 0.5
    ys = jnp.floor(rois[:, 2] + 0.5) * spatial_scale - 0.5
    xe = (jnp.floor(rois[:, 3] + 0.5) + 1.0) * spatial_scale - 0.5
    ye = (jnp.floor(rois[:, 4] + 0.5) + 1.0) * spatial_scale - 0.5
    rw = jnp.maximum(xe - xs, 0.1)
    rh = jnp.maximum(ye - ys, 0.1)
    bw = rw / ow
    bh = rh / oh
    sw = bw / spp
    sh = bh / spp

    # Expand the part-grid offsets onto the pooled grid (static gather, tiny).
    ph_idx = np.clip(np.floor(np.arange(oh) / float(oh) * part_size),
                     0, part_size - 1).astype(np.int32)
    pw_idx = np.clip(np.floor(np.arange(ow) / float(ow) * part_size),
                     0, part_size - 1).astype(np.int32)
    off_exp = offset[:, :, ph_idx[:, None], pw_idx[None, :]]     # (N, 2, oh, ow)
    tx = off_exp[:, 0] * trans_std
    ty = off_exp[:, 1] * trans_std

    pw_f = jnp.arange(ow, dtype=jnp.float32)[None, None, :]
    ph_f = jnp.arange(oh, dtype=jnp.float32)[None, :, None]
    wstart = pw_f * bw[:, None, None] + xs[:, None, None] + tx * rw[:, None, None]
    hstart = ph_f * bh[:, None, None] + ys[:, None, None] + ty * rh[:, None, None]
    s_f = jnp.arange(spp, dtype=jnp.float32)[None, :, None]
    ws_all = wstart.reshape(N, 1, P) + s_f * sw[:, None, None]   # (N, spp, P)
    hs_all = hstart.reshape(N, 1, P) + s_f * sh[:, None, None]   # (N, spp, P)

    # ---- group ROIs by batch and pad each group to a multiple of R ----------
    # Every grid step then touches a single feature map; consecutive steps of
    # the same image reuse the resident (C, H*W) block (no re-DMA).
    order = jnp.argsort(batch_idx)
    sorted_b = batch_idx[order]
    counts = jnp.bincount(batch_idx, length=B)
    pcounts = ((counts + R - 1) // R) * R
    pstarts = jnp.cumsum(pcounts) - pcounts
    starts = jnp.cumsum(counts) - counts
    pos = jnp.arange(N, dtype=jnp.int32) - starts[sorted_b].astype(jnp.int32)
    dest = pstarts[sorted_b].astype(jnp.int32) + pos             # slot per sorted ROI

    n_pad = _round_up(N + B * (R - 1), R)                        # static upper bound
    num_blocks = n_pad // R

    ws_pad = jnp.zeros((n_pad, spp, P), jnp.float32).at[dest].set(ws_all[order])
    hs_pad = jnp.zeros((n_pad, spp, P), jnp.float32).at[dest].set(hs_all[order])
    slot_b = jnp.zeros((n_pad,), jnp.int32).at[dest].set(sorted_b)
    block_batch = jnp.max(slot_b.reshape(num_blocks, R), axis=1).astype(jnp.int32)
    slot_of_roi = jnp.zeros((N,), jnp.int32).at[order].set(dest)

    # Lane-dense packed per-block layout: (num_blocks, spp, R*P).
    ws_blk = ws_pad.reshape(num_blocks, R, spp, P).transpose(0, 2, 1, 3)
    ws_blk = ws_blk.reshape(num_blocks, spp, R * P)
    hs_blk = hs_pad.reshape(num_blocks, R, spp, P).transpose(0, 2, 1, 3)
    hs_blk = hs_blk.reshape(num_blocks, spp, R * P)

    data2 = data.reshape(B, C, H * W)     # contiguous reshape (free in HBM)

    kernel = functools.partial(_deform_roi_pool_kernel, H=H, W=W)
    grid_spec = pltpu.PrefetchScalarGridSpec(
        num_scalar_prefetch=1,            # block_batch -> SMEM, used in index_map
        grid=(num_blocks,),
        in_specs=[
            pl.BlockSpec((1, spp, R * P), lambda j, bb: (j, 0, 0)),
            pl.BlockSpec((1, spp, R * P), lambda j, bb: (j, 0, 0)),
            pl.BlockSpec((1, C, H * W), lambda j, bb: (bb[j], 0, 0)),
        ],
        out_specs=pl.BlockSpec((1, C, R * P), lambda j, bb: (j, 0, 0)),
    )
    out_blocks = pl.pallas_call(
        kernel,
        grid_spec=grid_spec,
        out_shape=jax.ShapeDtypeStruct((num_blocks, C, R * P), data2.dtype),
        compiler_params=pltpu.CompilerParams(
            dimension_semantics=("parallel",),        # ROI blocks are independent
            vmem_limit_bytes=vmem_limit_bytes,        # tune per generation if needed
        ),
    )(block_batch, ws_blk, hs_blk, data2)

    out_pad = out_blocks.reshape(num_blocks, C, R, P).transpose(0, 2, 1, 3)
    out_pad = out_pad.reshape(n_pad, C, P)
    out = out_pad[slot_of_roi].reshape(N, C, oh, ow)
    return out


# ---------------------------------------------------------------------------
# Pallas kernel 2: tiled Linear (+ optional ReLU) for the offset FC stack.
# ---------------------------------------------------------------------------
def _linear_kernel(x_ref, w_ref, b_ref, o_ref, acc_ref, *, relu):
    k = pl.program_id(2)

    @pl.when(k == 0)
    def _init():
        acc_ref[...] = jnp.zeros_like(acc_ref)

    acc_ref[...] += jnp.dot(x_ref[...], w_ref[...],
                            preferred_element_type=jnp.float32)

    @pl.when(k == pl.num_programs(2) - 1)
    def _finish():
        r = acc_ref[...] + b_ref[...]
        if relu:
            r = jnp.maximum(r, 0.0)
        o_ref[...] = r.astype(o_ref.dtype)


@functools.partial(jax.jit, static_argnames=("relu", "bm", "bn", "bk"))
def pallas_linear(x, w, b, *, relu, bm=128, bn=512, bk=512):
    M, K = x.shape
    _, N = w.shape
    bm = min(bm, _round_up(M, 8))
    bk = min(bk, _round_up(K, 128))
    bn = min(bn, _round_up(N, 128))
    Mp, Kp, Np = _round_up(M, bm), _round_up(K, bk), _round_up(N, bn)

    xp = jnp.pad(x.astype(jnp.float32), ((0, Mp - M), (0, Kp - K)))
    wp = jnp.pad(w.astype(jnp.float32), ((0, Kp - K), (0, Np - N)))
    bp = jnp.pad(b.reshape(1, -1).astype(jnp.float32), ((0, 0), (0, Np - N)))

    out = pl.pallas_call(
        functools.partial(_linear_kernel, relu=relu),
        grid_spec=pltpu.PrefetchScalarGridSpec(
            num_scalar_prefetch=0,
            grid=(Mp // bm, Np // bn, Kp // bk),
            in_specs=[
                pl.BlockSpec((bm, bk), lambda i, j, k: (i, k)),
                pl.BlockSpec((bk, bn), lambda i, j, k: (k, j)),
                pl.BlockSpec((1, bn), lambda i, j, k: (0, j)),
            ],
            out_specs=pl.BlockSpec((bm, bn), lambda i, j, k: (i, j)),
            scratch_shapes=[pltpu.VMEM((bm, bn), jnp.float32)],
        ),
        out_shape=jax.ShapeDtypeStruct((Mp, Np), jnp.float32),
        compiler_params=pltpu.CompilerParams(
            dimension_semantics=("parallel", "parallel", "arbitrary")),
    )(xp, wp, bp)
    return out[:M, :N]


# ---------------------------------------------------------------------------
# DeformRoIPoolingPack (forward only)
# ---------------------------------------------------------------------------
class DeformRoIPoolingPackPallas:
    def __init__(self, spatial_scale, out_size, out_channels, no_trans,
                 group_size=1, part_size=None, sample_per_part=4, trans_std=0.0,
                 num_offset_fcs=3, deform_fc_channels=1024, roi_block=None, key=None):
        # TODO(synk): group_size > 1 (position-sensitive channel mapping) not implemented.
        assert group_size == 1
        assert 0.0 <= trans_std <= 1.0
        self.spatial_scale = float(spatial_scale)
        self.out_size = int(out_size)
        self.out_channels = out_channels
        self.no_trans = no_trans
        self.group_size = group_size
        self.part_size = self.out_size if part_size is None else int(part_size)
        self.sample_per_part = sample_per_part
        self.trans_std = float(trans_std)
        self.num_offset_fcs = num_offset_fcs
        self.deform_fc_channels = deform_fc_channels
        self.roi_block = roi_block
        self.fc_params = []
        if not no_trans:
            if key is None:
                key = jax.random.PRNGKey(0)
            ic = self.out_size * self.out_size * out_channels
            for li in range(num_offset_fcs):
                oc = (deform_fc_channels if li < num_offset_fcs - 1
                      else self.out_size * self.out_size * 2)
                key, kw, kb = jax.random.split(key, 3)
                if li == num_offset_fcs - 1:
                    # last layer zero-initialized, as in the PyTorch module
                    w = jnp.zeros((ic, oc), jnp.float32)
                    b = jnp.zeros((oc,), jnp.float32)
                else:
                    bound = 1.0 / np.sqrt(ic)
                    w = jax.random.uniform(kw, (ic, oc), jnp.float32, -bound, bound)
                    b = jax.random.uniform(kb, (oc,), jnp.float32, -bound, bound)
                self.fc_params += [w, b]
                ic = oc

    def _pool(self, data, rois, offset):
        return deform_roi_pool(data, rois, offset,
                               spatial_scale=self.spatial_scale,
                               out_size=self.out_size,
                               sample_per_part=self.sample_per_part,
                               trans_std=self.trans_std,
                               part_size=self.part_size,
                               roi_block=self.roi_block)

    def __call__(self, data, rois):
        assert data.shape[1] == self.out_channels
        n = rois.shape[0]
        zero_off = jnp.zeros((n, 2, self.part_size, self.part_size), jnp.float32)
        if self.no_trans:
            return self._pool(data, rois, zero_off)
        # pass 1: no_trans pooling (== zero offsets)
        x = self._pool(data, rois, zero_off)
        h = x.reshape(n, -1).astype(jnp.float32)
        nl = len(self.fc_params) // 2
        for li in range(nl):
            h = pallas_linear(h, self.fc_params[2 * li], self.fc_params[2 * li + 1],
                              relu=(li < nl - 1))
        offset = h.reshape(n, 2, self.out_size, self.out_size)
        # pass 2: deformable pooling with predicted offsets
        return self._pool(data, rois, offset)


# ---------------------------------------------------------------------------
# NumPy reference of the CUDA forward (host-only, correctness check)
# ---------------------------------------------------------------------------
def _np_deform_roi_pool(data, rois, offset, spatial_scale, out_size, spp, trans_std, part_size):
    N = rois.shape[0]
    _, C, H, W = data.shape
    oh = ow = out_size
    out = np.zeros((N, C, oh, ow), dtype=np.float32)
    rnd = lambda v: np.floor(v + 0.5)
    for n in range(N):
        b = int(rois[n, 0])
        rsw = rnd(rois[n, 1]) * spatial_scale - 0.5
        rsh = rnd(rois[n, 2]) * spatial_scale - 0.5
        rew = (rnd(rois[n, 3]) + 1.0) * spatial_scale - 0.5
        reh = (rnd(rois[n, 4]) + 1.0) * spatial_scale - 0.5
        rw = max(rew - rsw, 0.1)
        rh = max(reh - rsh, 0.1)
        bw, bh = rw / ow, rh / oh
        sw, sh = bw / spp, bh / spp
        for ph in range(oh):
            for pw in range(ow):
                p_h = min(max(int(np.floor(float(ph) / oh * part_size)), 0), part_size - 1)
                p_w = min(max(int(np.floor(float(pw) / ow * part_size)), 0), part_size - 1)
                tx = 0.0 if offset is None else float(offset[n, 0, p_h, p_w]) * trans_std
                ty = 0.0 if offset is None else float(offset[n, 1, p_h, p_w]) * trans_std
                wstart = pw * bw + rsw + tx * rw
                hstart = ph * bh + rsh + ty * rh
                for c in range(C):
                    s, cnt = 0.0, 0
                    for ih in range(spp):
                        for iw in range(spp):
                            w = wstart + iw * sw
                            h = hstart + ih * sh
                            if w < -0.5 or w > W - 0.5 or h < -0.5 or h > H - 0.5:
                                continue
                            w = min(max(w, 0.0), W - 1.0)
                            h = min(max(h, 0.0), H - 1.0)
                            x1, x2 = int(np.floor(w)), int(np.ceil(w))
                            y1, y2 = int(np.floor(h)), int(np.ceil(h))
                            dx, dy = w - x1, h - y1
                            v = (data[b, c, y1, x1] * (1 - dx) * (1 - dy)
                                 + data[b, c, y2, x1] * (1 - dx) * dy
                                 + data[b, c, y1, x2] * dx * (1 - dy)
                                 + data[b, c, y2, x2] * dx * dy)
                            s += v
                            cnt += 1
                    out[n, c, ph, pw] = 0.0 if cnt == 0 else s / cnt
    return out


if __name__ == "__main__":
    key = jax.random.PRNGKey(0)
    B, C, H, W = 2, 4, 16, 16
    out_size = 3
    spatial_scale = 0.5
    sample_per_part = 4
    trans_std = 0.1

    kd, ko, kfc = jax.random.split(key, 3)
    data = jax.random.normal(kd, (B, C, H, W), jnp.float32)
    rois = jnp.array([
        [0.0,  2.3,  3.1, 20.4, 18.7],
        [1.0,  0.2,  1.1, 30.7, 29.3],
        [0.0,  8.2,  6.4, 14.9, 25.3],
        [1.0, -2.0, -3.0, 10.0, 12.0],
    ], jnp.float32)

    # --- standalone check of the pooling kernel (nonzero offsets -> trans path) ---
    rand_off = jax.random.normal(ko, (rois.shape[0], 2, out_size, out_size), jnp.float32)
    pooled = deform_roi_pool(data, rois, rand_off, spatial_scale=spatial_scale,
                             out_size=out_size, sample_per_part=sample_per_part,
                             trans_std=trans_std, part_size=out_size)
    pooled = jax.block_until_ready(pooled)
    ref = _np_deform_roi_pool(np.asarray(data), np.asarray(rois), np.asarray(rand_off),
                              spatial_scale, out_size, sample_per_part, trans_std, out_size)
    # default-precision MXU (bf16 passes, f32 accumulate) -> bf16-level tolerance
    np.testing.assert_allclose(np.asarray(pooled), ref, rtol=2e-2, atol=2e-2)

    # --- full DeformRoIPoolingPack forward (pool -> offset FCs -> pool) ---
    pack = DeformRoIPoolingPackPallas(spatial_scale, out_size, C, no_trans=False,
                                      sample_per_part=sample_per_part, trans_std=trans_std,
                                      deform_fc_channels=64, key=kfc)
    out = pack(data, rois)
    out = jax.block_until_ready(out)

    pooled1 = _np_deform_roi_pool(np.asarray(data), np.asarray(rois), None,
                                  spatial_scale, out_size, sample_per_part, trans_std, out_size)
    h = pooled1.reshape(rois.shape[0], -1)
    params = [np.asarray(p) for p in pack.fc_params]
    nl = len(params) // 2
    for li in range(nl):
        h = h @ params[2 * li] + params[2 * li + 1]
        if li < nl - 1:
            h = np.maximum(h, 0.0)
    off_ref = h.reshape(rois.shape[0], 2, out_size, out_size)
    out_ref = _np_deform_roi_pool(np.asarray(data), np.asarray(rois), off_ref,
                                  spatial_scale, out_size, sample_per_part, trans_std, out_size)
    np.testing.assert_allclose(np.asarray(out), out_ref, rtol=2e-2, atol=2e-2)

    assert out.shape == (rois.shape[0], C, out_size, out_size)
    print("KERNEL_OK")
</pallas_src>

<mosaic_0001>
module attributes {stable_mosaic.version = 11 : i64} {
  func.func @_deform_roi_pool_kernel(%arg0: i32, %arg1: memref<3xi32, #tpu.memory_space<smem>>, %arg2: memref<1x4x144xf32, #tpu.memory_space<vmem>>, %arg3: memref<1x4x144xf32, #tpu.memory_space<vmem>>, %arg4: memref<1x4x256xf32, #tpu.memory_space<vmem>>, %arg5: memref<1x4x144xf32, #tpu.memory_space<vmem>>) attributes {dimension_semantics = [#tpu.dimension_semantics<parallel>], iteration_bounds = array<i64: 3>, scalar_prefetch = 1 : i64, scratch_operands = 0 : i64, tpu.core_type = #tpu.core_type<tc>, window_params = [{transform_indices = @transform_0, window_bounds = array<i64: 1, 4, 144>}, {transform_indices = @transform_1, window_bounds = array<i64: 1, 4, 144>}, {transform_indices = @transform_2, window_bounds = array<i64: 1, 4, 256>}, {transform_indices = @transform_3, window_bounds = array<i64: 1, 4, 144>}]} {
    %c0 = arith.constant 0 : index
    %c0_0 = arith.constant 0 : index
    %c0_1 = arith.constant 0 : index
    %0 = vector.load %arg2[%c0, %c0_0, %c0_1] : memref<1x4x144xf32, #tpu.memory_space<vmem>>, vector<1x4x144xf32>
    %1 = vector.shape_cast %0 : vector<1x4x144xf32> to vector<4x144xf32>
    %c0_2 = arith.constant 0 : index
    %c0_3 = arith.constant 0 : index
    %c0_4 = arith.constant 0 : index
    %2 = vector.load %arg3[%c0_2, %c0_3, %c0_4] : memref<1x4x144xf32, #tpu.memory_space<vmem>>, vector<1x4x144xf32>
    %3 = vector.shape_cast %2 : vector<1x4x144xf32> to vector<4x144xf32>
    %cst = arith.constant -5.000000e-01 : f32
    %4 = vector.broadcast %cst : f32 to vector<4x144xf32>
    %5 = arith.cmpf oge, %1, %4 : vector<4x144xf32>
    %cst_5 = arith.constant 1.550000e+01 : f32
    %6 = vector.broadcast %cst_5 : f32 to vector<4x144xf32>
    %7 = arith.cmpf ole, %1, %6 : vector<4x144xf32>
    %8 = arith.andi %5, %7 : vector<4x144xi1>
    %9 = arith.extui %8 : vector<4x144xi1> to vector<4x144xi32>
    %10 = arith.sitofp %9 : vector<4x144xi32> to vector<4x144xf32>
    %cst_6 = arith.constant -5.000000e-01 : f32
    %11 = vector.broadcast %cst_6 : f32 to vector<4x144xf32>
    %12 = arith.cmpf oge, %3, %11 : vector<4x144xf32>
    %cst_7 = arith.constant 1.550000e+01 : f32
    %13 = vector.broadcast %cst_7 : f32 to vector<4x144xf32>
    %14 = arith.cmpf ole, %3, %13 : vector<4x144xf32>
    %15 = arith.andi %12, %14 : vector<4x144xi1>
    %16 = arith.extui %15 : vector<4x144xi1> to vector<4x144xi32>
    %17 = arith.sitofp %16 : vector<4x144xi32> to vector<4x144xf32>
    %cst_8 = arith.constant 0.000000e+00 : f32
    %cst_9 = arith.constant 1.500000e+01 : f32
    %18 = vector.broadcast %cst_8 : f32 to vector<4x144xf32>
    %19 = arith.maximumf %18, %1 : vector<4x144xf32>
    %20 = vector.broadcast %cst_9 : f32 to vector<4x144xf32>
    %21 = arith.minimumf %20, %19 : vector<4x144xf32>
    %cst_10 = arith.constant 0.000000e+00 : f32
    %cst_11 = arith.constant 1.500000e+01 : f32
    %22 = vector.broadcast %cst_10 : f32 to vector<4x144xf32>
    %23 = arith.maximumf %22, %3 : vector<4x144xf32>
    %24 = vector.broadcast %cst_11 : f32 to vector<4x144xf32>
    %25 = arith.minimumf %24, %23 : vector<4x144xf32>
    %26 = tpu.iota {dimensions = array<i32: 0>} : vector<16x1x1xi32>
    %27 = arith.sitofp %26 : vector<16x1x1xi32> to vector<16x1x1xf32>
    %28 = tpu.iota {dimensions = array<i32: 0>} : vector<16x1x1xi32>
    %29 = arith.sitofp %28 : vector<16x1x1xi32> to vector<16x1x1xf32>
    %30 = vector.shape_cast %21 : vector<4x144xf32> to vector<1x4x144xf32>
    %31 = vector.broadcast %27 : vector<16x1x1xf32> to vector<16x4x144xf32>
    %32 = vector.broadcast %30 : vector<1x4x144xf32> to vector<16x4x144xf32>
    %33 = arith.subf %31, %32 : vector<16x4x144xf32>
    %34 = math.absf %33 : vector<16x4x144xf32>
    %cst_12 = arith.constant 1.000000e+00 : f32
    %35 = vector.broadcast %cst_12 : f32 to vector<16x4x144xf32>
    %36 = arith.subf %35, %34 : vector<16x4x144xf32>
    %cst_13 = arith.constant 0.000000e+00 : f32
    %37 = vector.broadcast %cst_13 : f32 to vector<16x4x144xf32>
    %38 = arith.maximumf %36, %37 : vector<16x4x144xf32>
    %39 = vector.shape_cast %10 : vector<4x144xf32> to vector<1x4x144xf32>
    %40 = vector.broadcast %39 : vector<1x4x144xf32> to vector<16x4x144xf32>
    %41 = arith.mulf %38, %40 : vector<16x4x144xf32>
    %cst_14 = arith.constant dense<0.000000e+00> : vector<16x144xf32>
    %42 = vector.multi_reduction <add>, %41, %cst_14 [1] : vector<16x4x144xf32> to vector<16x144xf32>
    %43 = vector.shape_cast %25 : vector<4x144xf32> to vector<1x4x144xf32>
    %44 = vector.broadcast %29 : vector<16x1x1xf32> to vector<16x4x144xf32>
    %45 = vector.broadcast %43 : vector<1x4x144xf32> to vector<16x4x144xf32>
    %46 = arith.subf %44, %45 : vector<16x4x144xf32>
    %47 = math.absf %46 : vector<16x4x144xf32>
    %cst_15 = arith.constant 1.000000e+00 : f32
    %48 = vector.broadcast %cst_15 : f32 to vector<16x4x144xf32>
    %49 = arith.subf %48, %47 : vector<16x4x144xf32>
    %cst_16 = arith.constant 0.000000e+00 : f32
    %50 = vector.broadcast %cst_16 : f32 to vector<16x4x144xf32>
    %51 = arith.maximumf %49, %50 : vector<16x4x144xf32>
    %52 = vector.shape_cast %17 : vector<4x144xf32> to vector<1x4x144xf32>
    %53 = vector.broadcast %52 : vector<1x4x144xf32> to vector<16x4x144xf32>
    %54 = arith.mulf %51, %53 : vector<16x4x144xf32>
    %cst_17 = arith.constant dense<0.000000e+00> : vector<16x144xf32>
    %55 = vector.multi_reduction <add>, %54, %cst_17 [1] : vector<16x4x144xf32> to vector<16x144xf32>
    %cst_18 = arith.constant dense<0.000000e+00> : vector<144xf32>
    %56 = vector.multi_reduction <add>, %10, %cst_18 [0] : vector<4x144xf32> to vector<144xf32>
    %57 = vector.shape_cast %56 : vector<144xf32> to vector<1x144xf32>
    %cst_19 = arith.constant dense<0.000000e+00> : vector<144xf32>
    %58 = vector.multi_reduction <add>, %17, %cst_19 [0] : vector<4x144xf32> to vector<144xf32>
    %59 = vector.shape_cast %58 : vector<144xf32> to vector<1x144xf32>
    %60 = arith.mulf %57, %59 : vector<1x144xf32>
    %61 = vector.shape_cast %55 : vector<16x144xf32> to vector<16x1x144xf32>
    %62 = vector.shape_cast %42 : vector<16x144xf32> to vector<1x16x144xf32>
    %63 = vector.broadcast %61 : vector<16x1x144xf32> to vector<16x16x144xf32>
    %64 = vector.broadcast %62 : vector<1x16x144xf32> to vector<16x16x144xf32>
    %65 = arith.mulf %63, %64 : vector<16x16x144xf32>
    %66 = vector.shape_cast %65 : vector<16x16x144xf32> to vector<256x144xf32>
    %c0_20 = arith.constant 0 : index
    %c0_21 = arith.constant 0 : index
    %c0_22 = arith.constant 0 : index
    %67 = vector.load %arg4[%c0_20, %c0_21, %c0_22] : memref<1x4x256xf32, #tpu.memory_space<vmem>>, vector<1x4x256xf32>
    %68 = vector.shape_cast %67 : vector<1x4x256xf32> to vector<4x256xf32>
    %cst_23 = arith.constant dense<0.000000e+00> : vector<4x144xf32>
    %69 = tpu.matmul %68, %66, %cst_23 {dimension_numbers = #tpu.dot_dimension_numbers<[1], [0], [0], [1], [0, 0, 1, 1], [], []>} : vector<4x256xf32>, vector<256x144xf32>, vector<4x144xf32> -> vector<4x144xf32>
    %cst_24 = arith.constant 0.000000e+00 : f32
    %70 = vector.broadcast %cst_24 : f32 to vector<1x144xf32>
    %71 = arith.cmpf ogt, %60, %70 : vector<1x144xf32>
    %cst_25 = arith.constant 1.000000e+00 : f32
    %72 = vector.broadcast %cst_25 : f32 to vector<1x144xf32>
    %73 = arith.maximumf %60, %72 : vector<1x144xf32>
    %74 = vector.broadcast %73 : vector<1x144xf32> to vector<4x144xf32>
    %75 = arith.divf %69, %74 : vector<4x144xf32>
    %cst_26 = arith.constant 0.000000e+00 : f32
    %76 = vector.shape_cast %71 : vector<1x144xi1> to vector<1x144xi1>
    %77 = vector.broadcast %76 : vector<1x144xi1> to vector<4x144xi1>
    %78 = vector.broadcast %cst_26 : f32 to vector<4x144xf32>
    %79 = arith.select %77, %75, %78 : vector<4x144xi1>, vector<4x144xf32>
    %c0_27 = arith.constant 0 : index
    %c0_28 = arith.constant 0 : index
    %c0_29 = arith.constant 0 : index
    %80 = vector.load %arg5[%c0_27, %c0_28, %c0_29] : memref<1x4x144xf32, #tpu.memory_space<vmem>>, vector<1x4x144xf32>
    %81 = vector.shape_cast %80 : vector<1x4x144xf32> to vector<4x144xf32>
    %82 = vector.shape_cast %79 : vector<4x144xf32> to vector<1x4x144xf32>
    tpu.vector_store %arg5[%c0_27, %c0_28, %c0_29], %82 {strides = array<i32>} : memref<1x4x144xf32, #tpu.memory_space<vmem>>, vector<1x4x144xf32>,
    return
  }
  func.func @transform_0(%arg0: i32, %arg1: memref<3xi32, #tpu.memory_space<smem>>) -> (i32, i32, i32) {
    %c0_i32 = arith.constant 0 : i32
    %c0_i32_0 = arith.constant 0 : i32
    %c0_i32_1 = arith.constant 0 : i32
    return %arg0, %c0_i32, %c0_i32_0 : i32, i32, i32
  }
  func.func @transform_1(%arg0: i32, %arg1: memref<3xi32, #tpu.memory_space<smem>>) -> (i32, i32, i32) {
    %c0_i32 = arith.constant 0 : i32
    %c0_i32_0 = arith.constant 0 : i32
    %c0_i32_1 = arith.constant 0 : i32
    return %arg0, %c0_i32, %c0_i32_0 : i32, i32, i32
  }
  func.func @transform_2(%arg0: i32, %arg1: memref<3xi32, #tpu.memory_space<smem>>) -> (i32, i32, i32) {
    %0 = arith.index_cast %arg0 : i32 to index
    %1 = memref.load %arg1[%0] : memref<3xi32, #tpu.memory_space<smem>>
    %c0_i32 = arith.constant 0 : i32
    %c0_i32_0 = arith.constant 0 : i32
    %c0_i32_1 = arith.constant 0 : i32
    return %1, %c0_i32, %c0_i32_0 : i32, i32, i32
  }
  func.func @transform_3(%arg0: i32, %arg1: memref<3xi32, #tpu.memory_space<smem>>) -> (i32, i32, i32) {
    %c0_i32 = arith.constant 0 : i32
    %c0_i32_0 = arith.constant 0 : i32
    %c0_i32_1 = arith.constant 0 : i32
    return %arg0, %c0_i32, %c0_i32_0 : i32, i32, i32
  }
}

</mosaic_0001>

<llo_original>
// kernel: deform_roi_pool.1
$region0: #{deform_roi_pool.1}
  #allocation0 [shape = 'u32[]', space=smem, size = 0x4, offset = 0x4, fixed_abs, tag = 'smem constant byte address 0x4 - core index']
  #allocation1 [shape = 'u32[144,128]{1,0:T(1,128)}', space=vmem, size = 0x12000, scoped, tag = 'internal scratch']
  #allocation2 [shape = 's32[1]{0}', space=sflag, size = 0x4, scoped, tag = 'scoped memory for deform_roi_pool.1']
  #allocation3 [shape = 'u8[512]{0}', space=smem, size = 0x200, scoped, tag = 'prefetched SMEM operand 0']
  %s0 = inlined_call_operand.vmem [shape: s32[3], index: 0, kind: input, shape index: {}]
  %s1 = inlined_call_operand.vmem [shape: f32[3,4,144], index: 1, kind: input, shape index: {}]
  %s2 = inlined_call_operand.vmem [shape: f32[3,4,144], index: 2, kind: input, shape index: {}]
  %s3 = inlined_call_operand.vmem [shape: f32[2,4,256], index: 3, kind: input, shape index: {}]
  %s4 = inlined_call_operand.vmem [shape: f32[3,4,144], index: 4, kind: output, shape index: {}]
  %s5 = sld [smem:[#allocation0]]
  $region45: #{deform_roi_pool.1} parent=0
    _
  %s7 = ssub.s32 1, %s5
  %s8 = scalar_select 0, %s7, %s5
  %s9 = sshll.u32 %s0, 4
  %s10 = int_to_ptr.vmem [resolvable:$true] %s9
  %12 = dma.vmem_to_smem %s10, 16, [#allocation3], [#allocation2]
  %13 = dma.done [#allocation2], 16
  %14 = sfence
  loop: start=0, step=1, limit=5
  $region2: #{deform_roi_pool.1} parent=0 // loop_pre_header
    _
  $region3: #{deform_roi_pool.1} parent=0 // loop_header
    %s16 = sphi 0, %s20
    %p17 = scmp.ge.s32.totalorder %s16, 5
    %s26 = sphi 0, %s28
    %s29 = sphi 0, %s26
    %s30 = sphi 0, %s29
    %s46 = sphi 0, %s30
    %s52 = sphi 0, %s54
    %s55 = sphi 0, %s52
    %s56 = sphi 0, %s55
    %s72 = sphi 0, %s56
    %s80 = sphi 0, %s82
    %s83 = sphi 0, %s80
    %s84 = sphi 0, %s83
    %s100 = sphi 0, %s84
    %s106 = sphi 0, %s108
    %s109 = sphi 0, %s106
    %s110 = sphi 0, %s109
    %s126 = sphi 0, %s110
  $region4: #{deform_roi_pool.1} parent=0 // loop_header_branch
    %19 = sbr.rel (%p17) target = $region8
  $region5: #{deform_roi_pool.1} parent=0 // loop_body
    %s21 = ssub.s32 %s16, 1
    %s22 = ssub.s32 %s16, 2
    %s23 = sadd.s32 %s16, 1
    %s24 = ssub.s32 %s16, %s23
    %p25 = scmp.eq.s32.totalorder %s24, 0
    %s27 = sadd.s32 %s26, 1
    %s28 = scalar_select %p25, %s26, %s27
    %p31 = pneg %p25
    %p32 = scmp.eq.s32.totalorder %s16, 2
    %p33 = por %p31, %p32
    %p34 = scmp.ne.s32.totalorder %s26, %s29
    %p35 = scmp.eq.s32.totalorder %s16, 0
    %p36 = por %p34, %p35
    %p37 = scmp.ne.s32.totalorder %s26, %s29
    %p38 = scmp.eq.s32.totalorder %s21, 2
    %p39 = por %p37, %p38
    %p40 = scmp.ne.s32.totalorder %s29, %s30
    %p41 = scmp.eq.s32.totalorder %s21, 0
    %p42 = por %p40, %p41
    %p43 = scmp.ne.s32.totalorder %s29, %s30
    %p44 = scmp.eq.s32.totalorder %s22, 2
    %p45 = por %p43, %p44
    %p47 = scmp.ne.s32.totalorder %s30, %s46
    %p48 = scmp.eq.s32.totalorder %s22, 0
    %p49 = por %p47, %p48
    %s50 = ssub.s32 %s16, %s23
    %p51 = scmp.eq.s32.totalorder %s50, 0
    %s53 = sadd.s32 %s52, 1
    %s54 = scalar_select %p51, %s52, %s53
    %p57 = pneg %p51
    %p58 = scmp.eq.s32.totalorder %s16, 2
    %p59 = por %p57, %p58
    %p60 = scmp.ne.s32.totalorder %s52, %s55
    %p61 = scmp.eq.s32.totalorder %s16, 0
    %p62 = por %p60, %p61
    %p63 = scmp.ne.s32.totalorder %s52, %s55
    %p64 = scmp.eq.s32.totalorder %s21, 2
    %p65 = por %p63, %p64
    %p66 = scmp.ne.s32.totalorder %s55, %s56
    %p67 = scmp.eq.s32.totalorder %s21, 0
    %p68 = por %p66, %p67
    %p69 = scmp.ne.s32.totalorder %s55, %s56
    %p70 = scmp.eq.s32.totalorder %s22, 2
    %p71 = por %p69, %p70
    %p73 = scmp.ne.s32.totalorder %s56, %s72
    %p74 = scmp.eq.s32.totalorder %s22, 0
    %p75 = por %p73, %p74
    %s76 = sld [smem:[#allocation3 + %s16]]
    %s77 = sld [smem:[#allocation3 + %s23]]
    %s78 = ssub.s32 %s76, %s77
    %p79 = scmp.eq.s32.totalorder %s78, 0
    %s81 = sadd.s32 %s80, 1
    %s82 = scalar_select %p79, %s80, %s81
    %p85 = pneg %p79
    %p86 = scmp.eq.s32.totalorder %s16, 2
    %p87 = por %p85, %p86
    %p88 = scmp.ne.s32.totalorder %s80, %s83
    %p89 = scmp.eq.s32.totalorder %s16, 0
    %p90 = por %p88, %p89
    %p91 = scmp.ne.s32.totalorder %s80, %s83
    %p92 = scmp.eq.s32.totalorder %s21, 2
    %p93 = por %p91, %p92
    %p94 = scmp.ne.s32.totalorder %s83, %s84
    %p95 = scmp.eq.s32.totalorder %s21, 0
    %p96 = por %p94, %p95
    %p97 = scmp.ne.s32.totalorder %s83, %s84
    %p98 = scmp.eq.s32.totalorder %s22, 2
    %p99 = por %p97, %p98
    %p101 = scmp.ne.s32.totalorder %s84, %s100
    %p102 = scmp.eq.s32.totalorder %s22, 0
    %p103 = por %p101, %p102
    %s104 = ssub.s32 %s16, %s23
    %p105 = scmp.eq.s32.totalorder %s104, 0
    %s107 = sadd.s32 %s106, 1
    %s108 = scalar_select %p105, %s106, %s107
    %p111 = pneg %p105
    %p112 = scmp.eq.s32.totalorder %s16, 2
    %p113 = por %p111, %p112
    %p114 = scmp.ne.s32.totalorder %s106, %s109
    %p115 = scmp.eq.s32.totalorder %s16, 0
    %p116 = por %p114, %p115
    %p117 = scmp.ne.s32.totalorder %s106, %s109
    %p118 = scmp.eq.s32.totalorder %s21, 2
    %p119 = por %p117, %p118
    %p120 = scmp.ne.s32.totalorder %s109, %s110
    %p121 = scmp.eq.s32.totalorder %s21, 0
    %p122 = por %p120, %p121
    %p123 = scmp.ne.s32.totalorder %s109, %s110
    %p124 = scmp.eq.s32.totalorder %s22, 2
    %p125 = por %p123, %p124
    %p127 = scmp.ne.s32.totalorder %s110, %s126
    %p128 = scmp.eq.s32.totalorder %s22, 0
    %p129 = por %p127, %p128
    %p130 = scmp.le.s32.totalorder 1, %s16
    %p131 = scmp.lt.s32.totalorder %s16, 4
    %p132 = pnand %p130, %p131
    %p133 = pneg %p132
    // Predicated region
    $region9: #{deform_roi_pool.1} parent=5 // pred_check
      _
    $region10: #{deform_roi_pool.1} parent=5 // pred_check_branch
      %135 = sbr.rel (%p132) target = $region12
    $region11: #{deform_roi_pool.1} parent=5 // pred_region
      %s136 = ssub.s32 %s16, 1
    $region12: #{deform_roi_pool.1} parent=5 // pred_fallthru
      _
    %p137 = scmp.lt.s32.totalorder %s16, 3
    // Predicated region
    $region13: #{deform_roi_pool.1} parent=5 // pred_check
      %p138 = pneg %p137
    $region14: #{deform_roi_pool.1} parent=5 // pred_check_branch
      %140 = sbr.rel (%p138) target = $region16
    $region15: #{deform_roi_pool.1} parent=5 // pred_region
      // Predicated region
      $region17: #{deform_roi_pool.1} parent=15 // pred_check
        %p141 = pneg %p36
      $region18: #{deform_roi_pool.1} parent=15 // pred_check_branch
        %143 = sbr.rel (%p141) target = $region20
      $region19: #{deform_roi_pool.1} parent=15 // pred_region
        %p144 = scmp.lt.s32.totalorder %s16, 2
        %s145 = scalar_select %p144, %s16, 2
        %s146 = smul.addr %s145, 2
        %s147 = smul.addr %s146, 4
        %s148 = scalar_lea.vmem %s1, %s147
      $region20: #{deform_roi_pool.1} parent=15 // pred_fallthru
        _
      // Predicated region
      $region21: #{deform_roi_pool.1} parent=15 // pred_check
        %p149 = pneg %p62
      $region22: #{deform_roi_pool.1} parent=15 // pred_check_branch
        %151 = sbr.rel (%p149) target = $region24
      $region23: #{deform_roi_pool.1} parent=15 // pred_region
        %p152 = scmp.lt.s32.totalorder %s16, 2
        %s153 = scalar_select %p152, %s16, 2
        %s154 = smul.addr %s153, 2
        %s155 = smul.addr %s154, 4
        %s156 = scalar_lea.vmem %s2, %s155
      $region24: #{deform_roi_pool.1} parent=15 // pred_fallthru
        _
      // Predicated region
      $region25: #{deform_roi_pool.1} parent=15 // pred_check
        %p157 = pneg %p90
      $region26: #{deform_roi_pool.1} parent=15 // pred_check_branch
        %159 = sbr.rel (%p157) target = $region28
      $region27: #{deform_roi_pool.1} parent=15 // pred_region
        %s160 = sld [smem:[#allocation3 + %s16]]
        %p161 = scmp.lt.s32.totalorder %s160, 1
        %s162 = scalar_select %p161, %s160, 1
        %s163 = smul.addr %s162, 2
        %s164 = smul.addr %s163, 4
        %s165 = scalar_lea.vmem %s3, %s164
        %s166 = sld [smem:[#allocation3 + %s16]]
      $region28: #{deform_roi_pool.1} parent=15 // pred_fallthru
        _
    $region16: #{deform_roi_pool.1} parent=5 // pred_fallthru
      _
    %p167 = scmp.le.s32.totalorder 1, %s16
    %p168 = scmp.lt.s32.totalorder %s16, 4
    %p169 = pnand %p167, %p168
    %p170 = pneg %p169
    // Predicated region
    $region29: #{deform_roi_pool.1} parent=5 // pred_check
      _
    $region30: #{deform_roi_pool.1} parent=5 // pred_check_branch
      %172 = sbr.rel (%p169) target = $region32
    $region31: #{deform_roi_pool.1} parent=5 // pred_region
      %s173 = ssub.s32 %s16, 1
      %p174 = scmp.lt.s32.totalorder %s21, 2
      %s175 = scalar_select %p174, %s21, 2
      %s176 = smul.addr %s175, 2
      %s177 = smul.addr %s176, 4
      %s178 = scalar_lea.vmem %s1, %s177
      %p179 = pneg %p42
      %p180 = pneg %p39
      %p181 = scmp.lt.s32.totalorder %s21, 2
      %s182 = scalar_select %p181, %s21, 2
      %s183 = smul.addr %s182, 2
      %s184 = smul.addr %s183, 4
      %s185 = scalar_lea.vmem %s2, %s184
      %p186 = pneg %p68
      %p187 = pneg %p65
      %s188 = sld [smem:[#allocation3 + %s21]]
      %p189 = scmp.lt.s32.totalorder %s188, 1
      %s190 = scalar_select %p189, %s188, 1
      %s191 = smul.addr %s190, 2
      %s192 = smul.addr %s191, 4
      %s193 = scalar_lea.vmem %s3, %s192
      %p194 = pneg %p96
      %p195 = pneg %p93
      %p196 = pneg %p122
      %p197 = pneg %p119
      %p198 = scmp.lt.s32.totalorder %s21, 2
      %s199 = scalar_select %p198, %s21, 2
      %s200 = smul.addr %s199, 2
      %s201 = smul.addr %s200, 4
      %s202 = scalar_lea.vmem %s4, %s201
      %p203 = scmp.lt.s32.totalorder %s21, 2
      %s204 = scalar_select %p203, %s21, 2
      %s205 = smul.addr %s204, 2
      %s206 = smul.addr %s205, 4
      %s207 = scalar_lea.vmem %s1, %s206
      %p208 = scmp.lt.s32.totalorder %s21, 2
      %s209 = scalar_select %p208, %s21, 2
      %s210 = smul.addr %s209, 2
      %s211 = smul.addr %s210, 4
      %s212 = scalar_lea.vmem %s2, %s211
      %s213 = sld [smem:[#allocation3 + %s21]]
      %p214 = scmp.lt.s32.totalorder %s213, 1
      %s215 = scalar_select %p214, %s213, 1
      %s216 = smul.addr %s215, 2
      %s217 = smul.addr %s216, 4
      %s218 = scalar_lea.vmem %s3, %s217
      %s219 = sld [smem:[#allocation3 + %s21]]
      %p220 = scmp.lt.s32.totalorder %s21, 2
      %s221 = scalar_select %p220, %s21, 2
      %s222 = smul.addr %s221, 2
      %s223 = smul.addr %s222, 4
      %s224 = scalar_lea.vmem %s4, %s223
      %v225 = vld [vmem:[%s207] sm:$0xff]
      %v226 = vld [vmem:[%s212] sm:$0xff]
      %vm227 = vcmp.ge.f32.partialorder %v225, -0.5
      %vm228 = vcmp.le.f32.partialorder %v225, 15.5
      %vm229 = vmand %vm227, %vm228
      %v230 = vsel %vm229, 1, 0
      %v231 = vcvt.s32.f32 %v230
      %vm232 = vcmp.ge.f32.partialorder %v226, -0.5
      %vm233 = vcmp.le.f32.partialorder %v226, 15.5
      %vm234 = vmand %vm232, %vm233
      %v235 = vsel %vm234, 1, 0
      %v236 = vcvt.s32.f32 %v235
      %v237 = vmax.f32 %v225, 0.0
      %v238 = vmin.f32 %v237, 15.0
      %v239 = vmax.f32 %v226, 0.0
      %v240 = vmin.f32 %v239, 15.0
      %v241 = vcvt.s32.f32 0
      %v242 = vcvt.s32.f32 1
      %v243 = vcvt.s32.f32 2
      %v244 = vcvt.s32.f32 3
      %v245 = vcvt.s32.f32 4
      %v246 = vcvt.s32.f32 5
      %v247 = vcvt.s32.f32 6
      %v248 = vcvt.s32.f32 7
      %v249 = vcvt.s32.f32 8
      %v250 = vcvt.s32.f32 9
      %v251 = vcvt.s32.f32 10
      %v252 = vcvt.s32.f32 11
      %v253 = vcvt.s32.f32 12
      %v254 = vcvt.s32.f32 13
      %v255 = vcvt.s32.f32 14
      %v256 = vcvt.s32.f32 15
      %v257 = vsub.f32 %v241, %v238
      %v258 = vsub.f32 %v242, %v238
      %v259 = vsub.f32 %v243, %v238
      %v260 = vsub.f32 %v244, %v238
      %v261 = vsub.f32 %v245, %v238
      %v262 = vsub.f32 %v246, %v238
      %v263 = vsub.f32 %v247, %v238
      %v264 = vsub.f32 %v248, %v238
      %v265 = vsub.f32 %v249, %v238
      %v266 = vsub.f32 %v250, %v238
      %v267 = vsub.f32 %v251, %v238
      %v268 = vsub.f32 %v252, %v238
      %v269 = vsub.f32 %v253, %v238
      %v270 = vsub.f32 %v254, %v238
      %v271 = vsub.f32 %v255, %v238
      %v272 = vsub.f32 %v256, %v238
      %v273 = vand.u32 2147483647, %v257
      %v274 = vand.u32 2147483647, %v258
      %v275 = vand.u32 2147483647, %v259
      %v276 = vand.u32 2147483647, %v260
      %v277 = vand.u32 2147483647, %v261
      %v278 = vand.u32 2147483647, %v262
      %v279 = vand.u32 2147483647, %v263
      %v280 = vand.u32 2147483647, %v264
      %v281 = vand.u32 2147483647, %v265
      %v282 = vand.u32 2147483647, %v266
      %v283 = vand.u32 2147483647, %v267
      %v284 = vand.u32 2147483647, %v268
      %v285 = vand.u32 2147483647, %v269
      %v286 = vand.u32 2147483647, %v270
      %v287 = vand.u32 2147483647, %v271
      %v288 = vand.u32 2147483647, %v272
      %v289 = vsub.f32 1.0, %v273
      %v290 = vsub.f32 1.0, %v274
      %v291 = vsub.f32 1.0, %v275
      %v292 = vsub.f32 1.0, %v276
      %v293 = vsub.f32 1.0, %v277
      %v294 = vsub.f32 1.0, %v278
      %v295 = vsub.f32 1.0, %v279
      %v296 = vsub.f32 1.0, %v280
      %v297 = vsub.f32 1.0, %v281
      %v298 = vsub.f32 1.0, %v282
      %v299 = vsub.f32 1.0, %v283
      %v300 = vsub.f32 1.0, %v284
      %v301 = vsub.f32 1.0, %v285
      %v302 = vsub.f32 1.0, %v286
      %v303 = vsub.f32 1.0, %v287
      %v304 = vsub.f32 1.0, %v288
      %v305 = vmax.f32 %v289, 0.0
      %v306 = vmax.f32 %v290, 0.0
      %v307 = vmax.f32 %v291, 0.0
      %v308 = vmax.f32 %v292, 0.0
      %v309 = vmax.f32 %v293, 0.0
      %v310 = vmax.f32 %v294, 0.0
      %v311 = vmax.f32 %v295, 0.0
      %v312 = vmax.f32 %v296, 0.0
      %v313 = vmax.f32 %v297, 0.0
      %v314 = vmax.f32 %v298, 0.0
      %v315 = vmax.f32 %v299, 0.0
      %v316 = vmax.f32 %v300, 0.0
      %v317 = vmax.f32 %v301, 0.0
      %v318 = vmax.f32 %v302, 0.0
      %v319 = vmax.f32 %v303, 0.0
      %v320 = vmax.f32 %v304, 0.0
      %v321 = vmul.f32 %v305, %v231
      %v322 = vmul.f32 %v306, %v231
      %v323 = vmul.f32 %v307, %v231
      %v324 = vmul.f32 %v308, %v231
      %v325 = vmul.f32 %v309, %v231
      %v326 = vmul.f32 %v310, %v231
      %v327 = vmul.f32 %v311, %v231
      %v328 = vmul.f32 %v312, %v231
      %v329 = vmul.f32 %v313, %v231
      %v330 = vmul.f32 %v314, %v231
      %v331 = vmul.f32 %v315, %v231
      %v332 = vmul.f32 %v316, %v231
      %v333 = vmul.f32 %v317, %v231
      %v334 = vmul.f32 %v318, %v231
      %v335 = vmul.f32 %v319, %v231
      %v336 = vmul.f32 %v320, %v231
      %v353 = vcombine.high %v321, %v321
      %v354 = vcombine.high %v322, %v322
      %v355 = vcombine.high %v323, %v323
      %v356 = vcombine.high %v324, %v324
      %v357 = vcombine.high %v325, %v325
      %v358 = vcombine.high %v326, %v326
      %v359 = vcombine.high %v327, %v327
      %v360 = vcombine.high %v328, %v328
      %v361 = vcombine.high %v329, %v329
      %v362 = vcombine.high %v330, %v330
      %v363 = vcombine.high %v331, %v331
      %v364 = vcombine.high %v332, %v332
      %v365 = vcombine.high %v333, %v333
      %v366 = vcombine.high %v334, %v334
      %v367 = vcombine.high %v335, %v335
      %v368 = vcombine.high %v336, %v336
      %vm385 = vcmask 1043456
      %v386 = vsel %vm385, %v321, 0.0
      %v387 = vrot.slane %v386, 4
      %v388 = vadd.f32 %v386, %v387
      %v389 = vrot.slane %v388, 2
      %v390 = vadd.f32 %v388, %v389
      %v391 = vrot.slane %v390, 1
      %v392 = vadd.f32 %v390, %v391
      %vm393 = vcmask 125952
      %v394 = vsel %vm393, %v353, 0.0
      %v395 = vrot.slane %v394, 4
      %v396 = vadd.f32 %v394, %v395
      %v397 = vrot.slane %v396, 2
      %v398 = vadd.f32 %v396, %v397
      %v399 = vrot.slane %v398, 1
      %v400 = vadd.f32 %v398, %v399
      %v401 = vsel %vm385, %v322, 0.0
      %v402 = vrot.slane %v401, 4
      %v403 = vadd.f32 %v401, %v402
      %v404 = vrot.slane %v403, 2
      %v405 = vadd.f32 %v403, %v404
      %v406 = vrot.slane %v405, 1
      %v407 = vadd.f32 %v405, %v406
      %v408 = vsel %vm393, %v354, 0.0
      %v409 = vrot.slane %v408, 4
      %v410 = vadd.f32 %v408, %v409
      %v411 = vrot.slane %v410, 2
      %v412 = vadd.f32 %v410, %v411
      %v413 = vrot.slane %v412, 1
      %v414 = vadd.f32 %v412, %v413
      %v415 = vsel %vm385, %v323, 0.0
      %v416 = vrot.slane %v415, 4
      %v417 = vadd.f32 %v415, %v416
      %v418 = vrot.slane %v417, 2
      %v419 = vadd.f32 %v417, %v418
      %v420 = vrot.slane %v419, 1
      %v421 = vadd.f32 %v419, %v420
      %v422 = vsel %vm393, %v355, 0.0
      %v423 = vrot.slane %v422, 4
      %v424 = vadd.f32 %v422, %v423
      %v425 = vrot.slane %v424, 2
      %v426 = vadd.f32 %v424, %v425
      %v427 = vrot.slane %v426, 1
      %v428 = vadd.f32 %v426, %v427
      %v429 = vsel %vm385, %v324, 0.0
      %v430 = vrot.slane %v429, 4
      %v431 = vadd.f32 %v429, %v430
      %v432 = vrot.slane %v431, 2
      %v433 = vadd.f32 %v431, %v432
      %v434 = vrot.slane %v433, 1
      %v435 = vadd.f32 %v433, %v434
      %v436 = vsel %vm393, %v356, 0.0
      %v437 = vrot.slane %v436, 4
      %v438 = vadd.f32 %v436, %v437
      %v439 = vrot.slane %v438, 2
      %v440 = vadd.f32 %v438, %v439
      %v441 = vrot.slane %v440, 1
      %v442 = vadd.f32 %v440, %v441
      %v443 = vsel %vm385, %v325, 0.0
      %v444 = vrot.slane %v443, 4
      %v445 = vadd.f32 %v443, %v444
      %v446 = vrot.slane %v445, 2
      %v447 = vadd.f32 %v445, %v446
      %v448 = vrot.slane %v447, 1
      %v449 = vadd.f32 %v447, %v448
      %v450 = vsel %vm393, %v357, 0.0
      %v451 = vrot.slane %v450, 4
      %v452 = vadd.f32 %v450, %v451
      %v453 = vrot.slane %v452, 2
      %v454 = vadd.f32 %v452, %v453
      %v455 = vrot.slane %v454, 1
      %v456 = vadd.f32 %v454, %v455
      %v457 = vsel %vm385, %v326, 0.0
      %v458 = vrot.slane %v457, 4
      %v459 = vadd.f32 %v457, %v458
      %v460 = vrot.slane %v459, 2
      %v461 = vadd.f32 %v459, %v460
      %v462 = vrot.slane %v461, 1
      %v463 = vadd.f32 %v461, %v462
      %v464 = vsel %vm393, %v358, 0.0
      %v465 = vrot.slane %v464, 4
      %v466 = vadd.f32 %v464, %v465
      %v467 = vrot.slane %v466, 2
      %v468 = vadd.f32 %v466, %v467
      %v469 = vrot.slane %v468, 1
      %v470 = vadd.f32 %v468, %v469
      %v471 = vsel %vm385, %v327, 0.0
      %v472 = vrot.slane %v471, 4
      %v473 = vadd.f32 %v471, %v472
      %v474 = vrot.slane %v473, 2
      %v475 = vadd.f32 %v473, %v474
      %v476 = vrot.slane %v475, 1
      %v477 = vadd.f32 %v475, %v476
      %v478 = vsel %vm393, %v359, 0.0
      %v479 = vrot.slane %v478, 4
      %v480 = vadd.f32 %v478, %v479
      %v481 = vrot.slane %v480, 2
      %v482 = vadd.f32 %v480, %v481
      %v483 = vrot.slane %v482, 1
      %v484 = vadd.f32 %v482, %v483
      %v485 = vsel %vm385, %v328, 0.0
      %v486 = vrot.slane %v485, 4
      %v487 = vadd.f32 %v485, %v486
      %v488 = vrot.slane %v487, 2
      %v489 = vadd.f32 %v487, %v488
      %v490 = vrot.slane %v489, 1
      %v491 = vadd.f32 %v489, %v490
      %v492 = vsel %vm393, %v360, 0.0
      %v493 = vrot.slane %v492, 4
      %v494 = vadd.f32 %v492, %v493
      %v495 = vrot.slane %v494, 2
      %v496 = vadd.f32 %v494, %v495
      %v497 = vrot.slane %v496, 1
      %v498 = vadd.f32 %v496, %v497
      %v499 = vsel %vm385, %v329, 0.0
      %v500 = vrot.slane %v499, 4
      %v501 = vadd.f32 %v499, %v500
      %v502 = vrot.slane %v501, 2
      %v503 = vadd.f32 %v501, %v502
      %v504 = vrot.slane %v503, 1
      %v505 = vadd.f32 %v503, %v504
      %v506 = vsel %vm393, %v361, 0.0
      %v507 = vrot.slane %v506, 4
      %v508 = vadd.f32 %v506, %v507
      %v509 = vrot.slane %v508, 2
      %v510 = vadd.f32 %v508, %v509
      %v511 = vrot.slane %v510, 1
      %v512 = vadd.f32 %v510, %v511
      %v513 = vsel %vm385, %v330, 0.0
      %v514 = vrot.slane %v513, 4
      %v515 = vadd.f32 %v513, %v514
      %v516 = vrot.slane %v515, 2
      %v517 = vadd.f32 %v515, %v516
      %v518 = vrot.slane %v517, 1
      %v519 = vadd.f32 %v517, %v518
      %v520 = vsel %vm393, %v362, 0.0
      %v521 = vrot.slane %v520, 4
      %v522 = vadd.f32 %v520, %v521
      %v523 = vrot.slane %v522, 2
      %v524 = vadd.f32 %v522, %v523
      %v525 = vrot.slane %v524, 1
      %v526 = vadd.f32 %v524, %v525
      %v527 = vsel %vm385, %v331, 0.0
      %v528 = vrot.slane %v527, 4
      %v529 = vadd.f32 %v527, %v528
      %v530 = vrot.slane %v529, 2
      %v531 = vadd.f32 %v529, %v530
      %v532 = vrot.slane %v531, 1
      %v533 = vadd.f32 %v531, %v532
      %v534 = vsel %vm393, %v363, 0.0
      %v535 = vrot.slane %v534, 4
      %v536 = vadd.f32 %v534, %v535
      %v537 = vrot.slane %v536, 2
      %v538 = vadd.f32 %v536, %v537
      %v539 = vrot.slane %v538, 1
      %v540 = vadd.f32 %v538, %v539
      %v541 = vsel %vm385, %v332, 0.0
      %v542 = vrot.slane %v541, 4
      %v543 = vadd.f32 %v541, %v542
      %v544 = vrot.slane %v543, 2
      %v545 = vadd.f32 %v543, %v544
      %v546 = vrot.slane %v545, 1
      %v547 = vadd.f32 %v545, %v546
      %v548 = vsel %vm393, %v364, 0.0
      %v549 = vrot.slane %v548, 4
      %v550 = vadd.f32 %v548, %v549
      %v551 = vrot.slane %v550, 2
      %v552 = vadd.f32 %v550, %v551
      %v553 = vrot.slane %v552, 1
      %v554 = vadd.f32 %v552, %v553
      %v555 = vsel %vm385, %v333, 0.0
      %v556 = vrot.slane %v555, 4
      %v557 = vadd.f32 %v555, %v556
      %v558 = vrot.slane %v557, 2
      %v559 = vadd.f32 %v557, %v558
      %v560 = vrot.slane %v559, 1
      %v561 = vadd.f32 %v559, %v560
      %v562 = vsel %vm393, %v365, 0.0
      %v563 = vrot.slane %v562, 4
      %v564 = vadd.f32 %v562, %v563
      %v565 = vrot.slane %v564, 2
      %v566 = vadd.f32 %v564, %v565
      %v567 = vrot.slane %v566, 1
      %v568 = vadd.f32 %v566, %v567
      %v569 = vsel %vm385, %v334, 0.0
      %v570 = vrot.slane %v569, 4
      %v571 = vadd.f32 %v569, %v570
      %v572 = vrot.slane %v571, 2
      %v573 = vadd.f32 %v571, %v572
      %v574 = vrot.slane %v573, 1
      %v575 = vadd.f32 %v573, %v574
      %v576 = vsel %vm393, %v366, 0.0
      %v577 = vrot.slane %v576, 4
      %v578 = vadd.f32 %v576, %v577
      %v579 = vrot.slane %v578, 2
      %v580 = vadd.f32 %v578, %v579
      %v581 = vrot.slane %v580, 1
      %v582 = vadd.f32 %v580, %v581
      %v583 = vsel %vm385, %v335, 0.0
      %v584 = vrot.slane %v583, 4
      %v585 = vadd.f32 %v583, %v584
      %v586 = vrot.slane %v585, 2
      %v587 = vadd.f32 %v585, %v586
      %v588 = vrot.slane %v587, 1
      %v589 = vadd.f32 %v587, %v588
      %v590 = vsel %vm393, %v367, 0.0
      %v591 = vrot.slane %v590, 4
      %v592 = vadd.f32 %v590, %v591
      %v593 = vrot.slane %v592, 2
      %v594 = vadd.f32 %v592, %v593
      %v595 = vrot.slane %v594, 1
      %v596 = vadd.f32 %v594, %v595
      %v597 = vsel %vm385, %v336, 0.0
      %v598 = vrot.slane %v597, 4
      %v599 = vadd.f32 %v597, %v598
      %v600 = vrot.slane %v599, 2
      %v601 = vadd.f32 %v599, %v600
      %v602 = vrot.slane %v601, 1
      %v603 = vadd.f32 %v601, %v602
      %v604 = vsel %vm393, %v368, 0.0
      %v605 = vrot.slane %v604, 4
      %v606 = vadd.f32 %v604, %v605
      %v607 = vrot.slane %v606, 2
      %v608 = vadd.f32 %v606, %v607
      %v609 = vrot.slane %v608, 1
      %v610 = vadd.f32 %v608, %v609
      %v611 = vsub.f32 %v241, %v240
      %v612 = vsub.f32 %v242, %v240
      %v613 = vsub.f32 %v243, %v240
      %v614 = vsub.f32 %v244, %v240
      %v615 = vsub.f32 %v245, %v240
      %v616 = vsub.f32 %v246, %v240
      %v617 = vsub.f32 %v247, %v240
      %v618 = vsub.f32 %v248, %v240
      %v619 = vsub.f32 %v249, %v240
      %v620 = vsub.f32 %v250, %v240
      %v621 = vsub.f32 %v251, %v240
      %v622 = vsub.f32 %v252, %v240
      %v623 = vsub.f32 %v253, %v240
      %v624 = vsub.f32 %v254, %v240
      %v625 = vsub.f32 %v255, %v240
      %v626 = vsub.f32 %v256, %v240
      %v627 = vand.u32 2147483647, %v611
      %v628 = vand.u32 2147483647, %v612
      %v629 = vand.u32 2147483647, %v613
      %v630 = vand.u32 2147483647, %v614
      %v631 = vand.u32 2147483647, %v615
      %v632 = vand.u32 2147483647, %v616
      %v633 = vand.u32 2147483647, %v617
      %v634 = vand.u32 2147483647, %v618
      %v635 = vand.u32 2147483647, %v619
      %v636 = vand.u32 2147483647, %v620
      %v637 = vand.u32 2147483647, %v621
      %v638 = vand.u32 2147483647, %v622
      %v639 = vand.u32 2147483647, %v623
      %v640 = vand.u32 2147483647, %v624
      %v641 = vand.u32 2147483647, %v625
      %v642 = vand.u32 2147483647, %v626
      %v643 = vsub.f32 1.0, %v627
      %v644 = vsub.f32 1.0, %v628
      %v645 = vsub.f32 1.0, %v629
      %v646 = vsub.f32 1.0, %v630
      %v647 = vsub.f32 1.0, %v631
      %v648 = vsub.f32 1.0, %v632
      %v649 = vsub.f32 1.0, %v633
      %v650 = vsub.f32 1.0, %v634
      %v651 = vsub.f32 1.0, %v635
      %v652 = vsub.f32 1.0, %v636
      %v653 = vsub.f32 1.0, %v637
      %v654 = vsub.f32 1.0, %v638
      %v655 = vsub.f32 1.0, %v639
      %v656 = vsub.f32 1.0, %v640
      %v657 = vsub.f32 1.0, %v641
      %v658 = vsub.f32 1.0, %v642
      %v659 = vmax.f32 %v643, 0.0
      %v660 = vmax.f32 %v644, 0.0
      %v661 = vmax.f32 %v645, 0.0
      %v662 = vmax.f32 %v646, 0.0
      %v663 = vmax.f32 %v647, 0.0
      %v664 = vmax.f32 %v648, 0.0
      %v665 = vmax.f32 %v649, 0.0
      %v666 = vmax.f32 %v650, 0.0
      %v667 = vmax.f32 %v651, 0.0
      %v668 = vmax.f32 %v652, 0.0
      %v669 = vmax.f32 %v653, 0.0
      %v670 = vmax.f32 %v654, 0.0
      %v671 = vmax.f32 %v655, 0.0
      %v672 = vmax.f32 %v656, 0.0
      %v673 = vmax.f32 %v657, 0.0
      %v674 = vmax.f32 %v658, 0.0
      %v675 = vmul.f32 %v659, %v236
      %v676 = vmul.f32 %v660, %v236
      %v677 = vmul.f32 %v661, %v236
      %v678 = vmul.f32 %v662, %v236
      %v679 = vmul.f32 %v663, %v236
      %v680 = vmul.f32 %v664, %v236
      %v681 = vmul.f32 %v665, %v236
      %v682 = vmul.f32 %v666, %v236
      %v683 = vmul.f32 %v667, %v236
      %v684 = vmul.f32 %v668, %v236
      %v685 = vmul.f32 %v669, %v236
      %v686 = vmul.f32 %v670, %v236
      %v687 = vmul.f32 %v671, %v236
      %v688 = vmul.f32 %v672, %v236
      %v689 = vmul.f32 %v673, %v236
      %v690 = vmul.f32 %v674, %v236
      %v707 = vcombine.high %v675, %v675
      %v708 = vcombine.high %v676, %v676
      %v709 = vcombine.high %v677, %v677
      %v710 = vcombine.high %v678, %v678
      %v711 = vcombine.high %v679, %v679
      %v712 = vcombine.high %v680, %v680
      %v713 = vcombine.high %v681, %v681
      %v714 = vcombine.high %v682, %v682
      %v715 = vcombine.high %v683, %v683
      %v716 = vcombine.high %v684, %v684
      %v717 = vcombine.high %v685, %v685
      %v718 = vcombine.high %v686, %v686
      %v719 = vcombine.high %v687, %v687
      %v720 = vcombine.high %v688, %v688
      %v721 = vcombine.high %v689, %v689
      %v722 = vcombine.high %v690, %v690
      %v739 = vsel %vm385, %v675, 0.0
      %v740 = vrot.slane %v739, 4
      %v741 = vadd.f32 %v739, %v740
      %v742 = vrot.slane %v741, 2
      %v743 = vadd.f32 %v741, %v742
      %v744 = vrot.slane %v743, 1
      %v745 = vadd.f32 %v743, %v744
      %v746 = vsel %vm393, %v707, 0.0
      %v747 = vrot.slane %v746, 4
      %v748 = vadd.f32 %v746, %v747
      %v749 = vrot.slane %v748, 2
      %v750 = vadd.f32 %v748, %v749
      %v751 = vrot.slane %v750, 1
      %v752 = vadd.f32 %v750, %v751
      %v753 = vsel %vm385, %v676, 0.0
      %v754 = vrot.slane %v753, 4
      %v755 = vadd.f32 %v753, %v754
      %v756 = vrot.slane %v755, 2
      %v757 = vadd.f32 %v755, %v756
      %v758 = vrot.slane %v757, 1
      %v759 = vadd.f32 %v757, %v758
      %v760 = vsel %vm393, %v708, 0.0
      %v761 = vrot.slane %v760, 4
      %v762 = vadd.f32 %v760, %v761
      %v763 = vrot.slane %v762, 2
      %v764 = vadd.f32 %v762, %v763
      %v765 = vrot.slane %v764, 1
      %v766 = vadd.f32 %v764, %v765
      %v767 = vsel %vm385, %v677, 0.0
      %v768 = vrot.slane %v767, 4
      %v769 = vadd.f32 %v767, %v768
      %v770 = vrot.slane %v769, 2
      %v771 = vadd.f32 %v769, %v770
      %v772 = vrot.slane %v771, 1
      %v773 = vadd.f32 %v771, %v772
      %v774 = vsel %vm393, %v709, 0.0
      %v775 = vrot.slane %v774, 4
      %v776 = vadd.f32 %v774, %v775
      %v777 = vrot.slane %v776, 2
      %v778 = vadd.f32 %v776, %v777
      %v779 = vrot.slane %v778, 1
      %v780 = vadd.f32 %v778, %v779
      %v781 = vsel %vm385, %v678, 0.0
      %v782 = vrot.slane %v781, 4
      %v783 = vadd.f32 %v781, %v782
      %v784 = vrot.slane %v783, 2
      %v785 = vadd.f32 %v783, %v784
      %v786 = vrot.slane %v785, 1
      %v787 = vadd.f32 %v785, %v786
      %v788 = vsel %vm393, %v710, 0.0
      %v789 = vrot.slane %v788, 4
      %v790 = vadd.f32 %v788, %v789
      %v791 = vrot.slane %v790, 2
      %v792 = vadd.f32 %v790, %v791
      %v793 = vrot.slane %v792, 1
      %v794 = vadd.f32 %v792, %v793
      %v795 = vsel %vm385, %v679, 0.0
      %v796 = vrot.slane %v795, 4
      %v797 = vadd.f32 %v795, %v796
      %v798 = vrot.slane %v797, 2
      %v799 = vadd.f32 %v797, %v798
      %v800 = vrot.slane %v799, 1
      %v801 = vadd.f32 %v799, %v800
      %v802 = vsel %vm393, %v711, 0.0
      %v803 = vrot.slane %v802, 4
      %v804 = vadd.f32 %v802, %v803
      %v805 = vrot.slane %v804, 2
      %v806 = vadd.f32 %v804, %v805
      %v807 = vrot.slane %v806, 1
      %v808 = vadd.f32 %v806, %v807
      %v809 = vsel %vm385, %v680, 0.0
      %v810 = vrot.slane %v809, 4
      %v811 = vadd.f32 %v809, %v810
      %v812 = vrot.slane %v811, 2
      %v813 = vadd.f32 %v811, %v812
      %v814 = vrot.slane %v813, 1
      %v815 = vadd.f32 %v813, %v814
      %v816 = vsel %vm393, %v712, 0.0
      %v817 = vrot.slane %v816, 4
      %v818 = vadd.f32 %v816, %v817
      %v819 = vrot.slane %v818, 2
      %v820 = vadd.f32 %v818, %v819
      %v821 = vrot.slane %v820, 1
      %v822 = vadd.f32 %v820, %v821
      %v823 = vsel %vm385, %v681, 0.0
      %v824 = vrot.slane %v823, 4
      %v825 = vadd.f32 %v823, %v824
      %v826 = vrot.slane %v825, 2
      %v827 = vadd.f32 %v825, %v826
      %v828 = vrot.slane %v827, 1
      %v829 = vadd.f32 %v827, %v828
      %v830 = vsel %vm393, %v713, 0.0
      %v831 = vrot.slane %v830, 4
      %v832 = vadd.f32 %v830, %v831
      %v833 = vrot.slane %v832, 2
      %v834 = vadd.f32 %v832, %v833
      %v835 = vrot.slane %v834, 1
      %v836 = vadd.f32 %v834, %v835
      %v837 = vsel %vm385, %v682, 0.0
      %v838 = vrot.slane %v837, 4
      %v839 = vadd.f32 %v837, %v838
      %v840 = vrot.slane %v839, 2
      %v841 = vadd.f32 %v839, %v840
      %v842 = vrot.slane %v841, 1
      %v843 = vadd.f32 %v841, %v842
      %v844 = vsel %vm393, %v714, 0.0
      %v845 = vrot.slane %v844, 4
      %v846 = vadd.f32 %v844, %v845
      %v847 = vrot.slane %v846, 2
      %v848 = vadd.f32 %v846, %v847
      %v849 = vrot.slane %v848, 1
      %v850 = vadd.f32 %v848, %v849
      %v851 = vsel %vm385, %v683, 0.0
      %v852 = vrot.slane %v851, 4
      %v853 = vadd.f32 %v851, %v852
      %v854 = vrot.slane %v853, 2
      %v855 = vadd.f32 %v853, %v854
      %v856 = vrot.slane %v855, 1
      %v857 = vadd.f32 %v855, %v856
      %v858 = vsel %vm393, %v715, 0.0
      %v859 = vrot.slane %v858, 4
      %v860 = vadd.f32 %v858, %v859
      %v861 = vrot.slane %v860, 2
      %v862 = vadd.f32 %v860, %v861
      %v863 = vrot.slane %v862, 1
      %v864 = vadd.f32 %v862, %v863
      %v865 = vsel %vm385, %v684, 0.0
      %v866 = vrot.slane %v865, 4
      %v867 = vadd.f32 %v865, %v866
      %v868 = vrot.slane %v867, 2
      %v869 = vadd.f32 %v867, %v868
      %v870 = vrot.slane %v869, 1
      %v871 = vadd.f32 %v869, %v870
      %v872 = vsel %vm393, %v716, 0.0
      %v873 = vrot.slane %v872, 4
      %v874 = vadd.f32 %v872, %v873
      %v875 = vrot.slane %v874, 2
      %v876 = vadd.f32 %v874, %v875
      %v877 = vrot.slane %v876, 1
      %v878 = vadd.f32 %v876, %v877
      %v879 = vsel %vm385, %v685, 0.0
      %v880 = vrot.slane %v879, 4
      %v881 = vadd.f32 %v879, %v880
      %v882 = vrot.slane %v881, 2
      %v883 = vadd.f32 %v881, %v882
      %v884 = vrot.slane %v883, 1
      %v885 = vadd.f32 %v883, %v884
      %v886 = vsel %vm393, %v717, 0.0
      %v887 = vrot.slane %v886, 4
      %v888 = vadd.f32 %v886, %v887
      %v889 = vrot.slane %v888, 2
      %v890 = vadd.f32 %v888, %v889
      %v891 = vrot.slane %v890, 1
      %v892 = vadd.f32 %v890, %v891
      %v893 = vsel %vm385, %v686, 0.0
      %v894 = vrot.slane %v893, 4
      %v895 = vadd.f32 %v893, %v894
      %v896 = vrot.slane %v895, 2
      %v897 = vadd.f32 %v895, %v896
      %v898 = vrot.slane %v897, 1
      %v899 = vadd.f32 %v897, %v898
      %v900 = vsel %vm393, %v718, 0.0
      %v901 = vrot.slane %v900, 4
      %v902 = vadd.f32 %v900, %v901
      %v903 = vrot.slane %v902, 2
      %v904 = vadd.f32 %v902, %v903
      %v905 = vrot.slane %v904, 1
      %v906 = vadd.f32 %v904, %v905
      %v907 = vsel %vm385, %v687, 0.0
      %v908 = vrot.slane %v907, 4
      %v909 = vadd.f32 %v907, %v908
      %v910 = vrot.slane %v909, 2
      %v911 = vadd.f32 %v909, %v910
      %v912 = vrot.slane %v911, 1
      %v913 = vadd.f32 %v911, %v912
      %v914 = vsel %vm393, %v719, 0.0
      %v915 = vrot.slane %v914, 4
      %v916 = vadd.f32 %v914, %v915
      %v917 = vrot.slane %v916, 2
      %v918 = vadd.f32 %v916, %v917
      %v919 = vrot.slane %v918, 1
      %v920 = vadd.f32 %v918, %v919
      %v921 = vsel %vm385, %v688, 0.0
      %v922 = vrot.slane %v921, 4
      %v923 = vadd.f32 %v921, %v922
      %v924 = vrot.slane %v923, 2
      %v925 = vadd.f32 %v923, %v924
      %v926 = vrot.slane %v925, 1
      %v927 = vadd.f32 %v925, %v926
      %v928 = vsel %vm393, %v720, 0.0
      %v929 = vrot.slane %v928, 4
      %v930 = vadd.f32 %v928, %v929
      %v931 = vrot.slane %v930, 2
      %v932 = vadd.f32 %v930, %v931
      %v933 = vrot.slane %v932, 1
      %v934 = vadd.f32 %v932, %v933
      %v935 = vsel %vm385, %v689, 0.0
      %v936 = vrot.slane %v935, 4
      %v937 = vadd.f32 %v935, %v936
      %v938 = vrot.slane %v937, 2
      %v939 = vadd.f32 %v937, %v938
      %v940 = vrot.slane %v939, 1
      %v941 = vadd.f32 %v939, %v940
      %v942 = vsel %vm393, %v721, 0.0
      %v943 = vrot.slane %v942, 4
      %v944 = vadd.f32 %v942, %v943
      %v945 = vrot.slane %v944, 2
      %v946 = vadd.f32 %v944, %v945
      %v947 = vrot.slane %v946, 1
      %v948 = vadd.f32 %v946, %v947
      %v949 = vsel %vm385, %v690, 0.0
      %v950 = vrot.slane %v949, 4
      %v951 = vadd.f32 %v949, %v950
      %v952 = vrot.slane %v951, 2
      %v953 = vadd.f32 %v951, %v952
      %v954 = vrot.slane %v953, 1
      %v955 = vadd.f32 %v953, %v954
      %v956 = vsel %vm393, %v722, 0.0
      %v957 = vrot.slane %v956, 4
      %v958 = vadd.f32 %v956, %v957
      %v959 = vrot.slane %v958, 2
      %v960 = vadd.f32 %v958, %v959
      %v961 = vrot.slane %v960, 1
      %v962 = vadd.f32 %v960, %v961
      %v964 = vcombine.high %v231, %v231
      %v966 = vsel %vm385, %v231, 0.0
      %v967 = vrot.slane %v966, 4
      %v968 = vadd.f32 %v966, %v967
      %v969 = vrot.slane %v968, 2
      %v970 = vadd.f32 %v968, %v969
      %v971 = vrot.slane %v970, 1
      %v972 = vadd.f32 %v970, %v971
      %v973 = vsel %vm393, %v964, 0.0
      %v974 = vrot.slane %v973, 4
      %v975 = vadd.f32 %v973, %v974
      %v976 = vrot.slane %v975, 2
      %v977 = vadd.f32 %v975, %v976
      %v978 = vrot.slane %v977, 1
      %v979 = vadd.f32 %v977, %v978
      %v981 = vcombine.high %v236, %v236
      %v983 = vsel %vm385, %v236, 0.0
      %v984 = vrot.slane %v983, 4
      %v985 = vadd.f32 %v983, %v984
      %v986 = vrot.slane %v985, 2
      %v987 = vadd.f32 %v985, %v986
      %v988 = vrot.slane %v987, 1
      %v989 = vadd.f32 %v987, %v988
      %v990 = vsel %vm393, %v981, 0.0
      %v991 = vrot.slane %v990, 4
      %v992 = vadd.f32 %v990, %v991
      %v993 = vrot.slane %v992, 2
      %v994 = vadd.f32 %v992, %v993
      %v995 = vrot.slane %v994, 1
      %v996 = vadd.f32 %v994, %v995
      %v997 = vmul.f32 %v972, %v989
      %v998 = vmul.f32 %v979, %v996
      %vm1031 = vcmask 1041409
      %v1032 = vsel %vm1031, %v407, %v392
      %vm1033 = vcmask 1042434
      %v1034 = vsel %vm1033, %v421, %v1032
      %vm1035 = vcmask 1043459
      %v1036 = vsel %vm1035, %v435, %v1034
      %vm1037 = vcmask 1044484
      %v1038 = vsel %vm1037, %v449, %v1036
      %vm1039 = vcmask 1045509
      %v1040 = vsel %vm1039, %v463, %v1038
      %vm1041 = vcmask 1046534
      %v1042 = vsel %vm1041, %v477, %v1040
      %vm1043 = vcmask 1047559
      %v1044 = vsel %vm1043, %v491, %v1042
      %v1045 = vsel %vm1031, %v414, %v400
      %v1046 = vsel %vm1033, %v428, %v1045
      %v1047 = vsel %vm1035, %v442, %v1046
      %v1048 = vsel %vm1037, %v456, %v1047
      %v1049 = vsel %vm1039, %v470, %v1048
      %v1050 = vsel %vm1041, %v484, %v1049
      %v1051 = vsel %vm1043, %v498, %v1050
      %v1052 = vsel %vm1031, %v519, %v505
      %v1053 = vsel %vm1033, %v533, %v1052
      %v1054 = vsel %vm1035, %v547, %v1053
      %v1055 = vsel %vm1037, %v561, %v1054
      %v1056 = vsel %vm1039, %v575, %v1055
      %v1057 = vsel %vm1041, %v589, %v1056
      %v1058 = vsel %vm1043, %v603, %v1057
      %v1059 = vsel %vm1031, %v526, %v512
      %v1060 = vsel %vm1033, %v540, %v1059
      %v1061 = vsel %vm1035, %v554, %v1060
      %v1062 = vsel %vm1037, %v568, %v1061
      %v1063 = vsel %vm1039, %v582, %v1062
      %v1064 = vsel %vm1041, %v596, %v1063
      %v1065 = vsel %vm1043, %v610, %v1064
      %v1070 = vmul.f32 %v745, %v1044
      %v1071 = vmul.f32 %v752, %v1051
      %v1072 = vmul.f32 %v745, %v1058
      %v1073 = vmul.f32 %v752, %v1065
      %v1074 = vmul.f32 %v759, %v1044
      %v1075 = vmul.f32 %v766, %v1051
      %v1076 = vmul.f32 %v759, %v1058
      %v1077 = vmul.f32 %v766, %v1065
      %v1078 = vmul.f32 %v773, %v1044
      %v1079 = vmul.f32 %v780, %v1051
      %v1080 = vmul.f32 %v773, %v1058
      %v1081 = vmul.f32 %v780, %v1065
      %v1082 = vmul.f32 %v787, %v1044
      %v1083 = vmul.f32 %v794, %v1051
      %v1084 = vmul.f32 %v787, %v1058
      %v1085 = vmul.f32 %v794, %v1065
      %v1086 = vmul.f32 %v801, %v1044
      %v1087 = vmul.f32 %v808, %v1051
      %v1088 = vmul.f32 %v801, %v1058
      %v1089 = vmul.f32 %v808, %v1065
      %v1090 = vmul.f32 %v815, %v1044
      %v1091 = vmul.f32 %v822, %v1051
      %v1092 = vmul.f32 %v815, %v1058
      %v1093 = vmul.f32 %v822, %v1065
      %v1094 = vmul.f32 %v829, %v1044
      %v1095 = vmul.f32 %v836, %v1051
      %v1096 = vmul.f32 %v829, %v1058
      %v1097 = vmul.f32 %v836, %v1065
      %v1098 = vmul.f32 %v843, %v1044
      %v1099 = vmul.f32 %v850, %v1051
      %v1100 = vmul.f32 %v843, %v1058
      %v1101 = vmul.f32 %v850, %v1065
      %v1102 = vmul.f32 %v857, %v1044
      %v1103 = vmul.f32 %v864, %v1051
      %v1104 = vmul.f32 %v857, %v1058
      %v1105 = vmul.f32 %v864, %v1065
      %v1106 = vmul.f32 %v871, %v1044
      %v1107 = vmul.f32 %v878, %v1051
      %v1108 = vmul.f32 %v871, %v1058
      %v1109 = vmul.f32 %v878, %v1065
      %v1110 = vmul.f32 %v885, %v1044
      %v1111 = vmul.f32 %v892, %v1051
      %v1112 = vmul.f32 %v885, %v1058
      %v1113 = vmul.f32 %v892, %v1065
      %v1114 = vmul.f32 %v899, %v1044
      %v1115 = vmul.f32 %v906, %v1051
      %v1116 = vmul.f32 %v899, %v1058
      %v1117 = vmul.f32 %v906, %v1065
      %v1118 = vmul.f32 %v913, %v1044
      %v1119 = vmul.f32 %v920, %v1051
      %v1120 = vmul.f32 %v913, %v1058
      %v1121 = vmul.f32 %v920, %v1065
      %v1122 = vmul.f32 %v927, %v1044
      %v1123 = vmul.f32 %v934, %v1051
      %v1124 = vmul.f32 %v927, %v1058
      %v1125 = vmul.f32 %v934, %v1065
      %v1126 = vmul.f32 %v941, %v1044
      %v1127 = vmul.f32 %v948, %v1051
      %v1128 = vmul.f32 %v941, %v1058
      %v1129 = vmul.f32 %v948, %v1065
      %v1130 = vmul.f32 %v955, %v1044
      %v1131 = vmul.f32 %v962, %v1051
      %v1132 = vmul.f32 %v955, %v1058
      %v1133 = vmul.f32 %v962, %v1065
      %v1134 = vld [vmem:[%s218] sm:$0xff]
      %v1136 = vcombine.high %v1134, %v1134
      %1138 = vmatprep.subr.mxu0 %v1071
      %1139 = vmatpush1.msra.mxu0 %v1070
      %1140 = vmatprep.subr.mxu0 %v1073
      %1141 = vmatpush1.msra.mxu0 %v1072
      %1142 = vmatprep.subr.mxu0 %v1075
      %1143 = vmatpush1.msra.mxu0 %v1074
      %1144 = vmatprep.subr.mxu0 %v1077
      %1145 = vmatpush1.msra.mxu0 %v1076
      %1146 = vmatprep.subr.mxu0 %v1079
      %1147 = vmatpush1.msra.mxu0 %v1078
      %1148 = vmatprep.subr.mxu0 %v1081
      %1149 = vmatpush1.msra.mxu0 %v1080
      %1150 = vmatprep.subr.mxu0 %v1083
      %1151 = vmatpush1.msra.mxu0 %v1082
      %1152 = vmatprep.subr.mxu0 %v1085
      %1153 = vmatpush1.msra.mxu0 %v1084
      %1154 = vmatprep.subr.mxu0 %v1087
      %1155 = vmatpush1.msra.mxu0 %v1086
      %1156 = vmatprep.subr.mxu0 %v1089
      %1157 = vmatpush1.msra.mxu0 %v1088
      %1158 = vmatprep.subr.mxu0 %v1091
      %1159 = vmatpush1.msra.mxu0 %v1090
      %1160 = vmatprep.subr.mxu0 %v1093
      %1161 = vmatpush1.msra.mxu0 %v1092
      %1162 = vmatprep.subr.mxu0 %v1095
      %1163 = vmatpush1.msra.mxu0 %v1094
      %1164 = vmatprep.subr.mxu0 %v1097
      %1165 = vmatpush1.msra.mxu0 %v1096
      %1166 = vmatprep.subr.mxu0 %v1099
      %1167 = vmatpush1.msra.mxu0 %v1098
      %1168 = vmatprep.subr.mxu0 %v1101
      %1169 = vmatpush1.msra.mxu0 %v1100
      %1170 = vmatprep.subr.mxu0 %v1103
      %1171 = vmatpush1.msra.mxu0 %v1102
      %1172 = vmatprep.subr.mxu0 %v1105
      %1173 = vmatpush1.msra.mxu0 %v1104
      %1174 = vmatprep.subr.mxu0 %v1107
      %1175 = vmatpush1.msra.mxu0 %v1106
      %1176 = vmatprep.subr.mxu0 %v1109
      %1177 = vmatpush1.msra.mxu0 %v1108
      %1178 = vmatprep.subr.mxu0 %v1111
      %1179 = vmatpush1.msra.mxu0 %v1110
      %1180 = vmatprep.subr.mxu0 %v1113
      %1181 = vmatpush1.msra.mxu0 %v1112
      %1182 = vmatprep.subr.mxu0 %v1115
      %1183 = vmatpush1.msra.mxu0 %v1114
      %1184 = vmatprep.subr.mxu0 %v1117
      %1185 = vmatpush1.msra.mxu0 %v1116
      %1186 = vmatprep.subr.mxu0 %v1119
      %1187 = vmatpush1.msra.mxu0 %v1118
      %1188 = vmatprep.subr.mxu0 %v1121
      %1189 = vmatpush1.msra.mxu0 %v1120
      %1190 = vmatprep.subr.mxu0 %v1123
      %1191 = vmatpush1.msra.mxu0 %v1122
      %1192 = vmatprep.subr.mxu0 %v1125
      %1193 = vmatpush1.msra.mxu0 %v1124
      %1194 = vmatprep.subr.mxu0 %v1127
      %1195 = vmatpush1.msra.mxu0 %v1126
      %1196 = vmatprep.subr.mxu0 %v1129
      %1197 = vmatpush1.msra.mxu0 %v1128
      %1198 = vmatprep.subr.mxu0 %v1131
      %1199 = vmatpush1.msra.mxu0 %v1130
      %1200 = vmatprep.subr.mxu0 %v1133
      %1201 = vmatpush1.msra.mxu0 %v1132
      %1202 = vmatprep.mubr.f32.mxu0 %v1136
      %1203 = vmatmul.mubr.f32.gmra.mrb[0].mxu0 %v1134
      %v1204 = vpop.f32.mrb[0].mxu0
      %v1205 = vadd.f32 0.0, %v1204
      %v1206 = vpop.f32.mrb[0].mxu0
      %v1207 = vadd.f32 0.0, %v1206
      %1208 = vdwg.mxu0
      %vm1209 = vcmp.gt.f32.partialorder %v997, 0.0
      %vm1210 = vcmp.gt.f32.partialorder %v998, 0.0
      %v1211 = vmax.f32 %v997, 1.0
      %v1212 = vmax.f32 %v998, 1.0
      %v1213 = vrcp.pop %v1211
      %v1214 = vmul.f32 %v1205, %v1213
      %v1215 = vrcp.pop %v1212
      %v1216 = vmul.f32 %v1207, %v1215
      %v1217 = vsel %vm1209, 1, 0
      %v1218 = vsel %vm1210, 1, 0
      %vm1219 = vcmp.eq.s32.totalorder %v1217, 1
      %vm1220 = vcmp.eq.s32.totalorder %v1218, 1
      %v1221 = vsel %vm1219, %v1214, 0.0
      %v1222 = vsel %vm1220, %v1216, 0.0
      %v1225 = vcombine.low %v1221, %v1222
      %vm1227 = vcmask 130052
      %vm1228 = vmor %vm1227, %vm385
      %1229 = vst.msk [vmem:[%s224] sm:$0xff] %vm1228, %v1225
      %p1230 = scmp.lt.s32.totalorder %s21, 2
      %s1231 = scalar_select %p1230, %s21, 2
      %s1232 = smul.addr %s1231, 2
      %s1233 = smul.addr %s1232, 4
      %s1234 = scalar_lea.vmem %s4, %s1233
      // Predicated region
      $region33: #{deform_roi_pool.1} parent=31 // pred_check
        %p1235 = pneg %p119
      $region34: #{deform_roi_pool.1} parent=31 // pred_check_branch
        %1237 = sbr.rel (%p1235) target = $region36
      $region35: #{deform_roi_pool.1} parent=31 // pred_region
        _
      $region36: #{deform_roi_pool.1} parent=31 // pred_fallthru
        _
    $region32: #{deform_roi_pool.1} parent=5 // pred_fallthru
      _
    %p1238 = scmp.le.s32.totalorder 2, %s16
    // Predicated region
    $region37: #{deform_roi_pool.1} parent=5 // pred_check
      %p1239 = pneg %p1238
    $region38: #{deform_roi_pool.1} parent=5 // pred_check_branch
      %1241 = sbr.rel (%p1239) target = $region40
    $region39: #{deform_roi_pool.1} parent=5 // pred_region
      %s1242 = ssub.s32 %s16, 2
      // Predicated region
      $region41: #{deform_roi_pool.1} parent=39 // pred_check
        %p1243 = pneg %p125
      $region42: #{deform_roi_pool.1} parent=39 // pred_check_branch
        %1245 = sbr.rel (%p1243) target = $region44
      $region43: #{deform_roi_pool.1} parent=39 // pred_region
        %p1246 = scmp.lt.s32.totalorder %s22, 2
        %s1247 = scalar_select %p1246, %s22, 2
        %s1248 = smul.addr %s1247, 2
        %s1249 = smul.addr %s1248, 4
        %s1250 = scalar_lea.vmem %s4, %s1249
      $region44: #{deform_roi_pool.1} parent=39 // pred_fallthru
        _
    $region40: #{deform_roi_pool.1} parent=5 // pred_fallthru
      _
  $region6: #{deform_roi_pool.1} parent=0 // loop_footer
    %s20 = sadd.s32 1, %s16
  $region7: #{deform_roi_pool.1} parent=0 // loop_footer_branch
    %15 = sbr.rel target = $region3
  $region8: #{deform_roi_pool.1} parent=0 // loop_exit
    _

</llo_original>
